<compile_context>
chip_gen: v7x
topology: tpu7x:2x2x1
jax: 0.10.0
libtpu: 0.0.40
codegen_flags: <defaults>
</compile_context>

<pallas_src>
import jax
import jax.numpy as jnp
from jax.experimental import pallas as pl
from jax.experimental.pallas import tpu as pltpu

# Hyperparameters from the PyTorch script
INPUT_SIZE = 140
KERNEL_SIZE = 2
CONV_OUT_CH = 20
CONV_OUT_W = INPUT_SIZE - KERNEL_SIZE + 1   # 139
HIDDEN = (128, 64)
OUTPUT_SIZE = 5
OUT_PAD = 128                               # lane-dense output width
NEG_BIG = -1e30                             # bias for padded logit columns


def _conv_two_layer_kernel(x_ref, w1_ref, b1_ref, w2_ref, b2_ref,
                           w3_ref, b3_ref, out_ref):
    x = x_ref[...]                                                  # (bt, 140) bf16

    # Layer 1: fused Conv1d + Linear1 as a single (140 -> 128) matmul, f32 acc.
    h1 = jnp.dot(x, w1_ref[...], preferred_element_type=jnp.float32) + b1_ref[...]
    h1 = jnp.maximum(h1, 0.0)

    # Layer 2: 128 -> 64
    h2 = jnp.dot(h1.astype(jnp.bfloat16), w2_ref[...],
                 preferred_element_type=jnp.float32) + b2_ref[...]
    h2 = jnp.maximum(h2, 0.0)

    # Layer 3: 64 -> 128 (columns >= 5 are padding with -1e30 bias)
    logits = jnp.dot(h2.astype(jnp.bfloat16), w3_ref[...],
                     preferred_element_type=jnp.float32) + b3_ref[...]

    # Stable log-softmax over dim=1; padded columns contribute exp(-huge) == 0.
    m = jnp.max(logits, axis=-1, keepdims=True)
    z = logits - m
    lse = jnp.log(jnp.sum(jnp.exp(z), axis=-1, keepdims=True))
    out_ref[...] = z - lse


def _prepare_params(params):
    """Fold Conv1d+Linear1 and pad the last layer to 128 lanes (host-side glue)."""
    conv_w = params["conv_w"].astype(jnp.float32)   # (20, 1, 2)
    conv_b = params["conv_b"].astype(jnp.float32)   # (20,)
    W1 = params["W1"].astype(jnp.float32)           # (128, 2780)
    b1 = params["b1"].astype(jnp.float32)           # (128,)
    W2 = params["W2"].astype(jnp.float32)           # (64, 128)
    b2 = params["b2"].astype(jnp.float32)           # (64,)
    W3 = params["W3"].astype(jnp.float32)           # (5, 64)
    b3 = params["b3"].astype(jnp.float32)           # (5,)

    w_tap0 = conv_w[:, 0, 0]                        # (20,)
    w_tap1 = conv_w[:, 0, 1]                        # (20,)
    # Linear1 acts on the channel-major flatten of (B, 20, 139).
    W1r = W1.T.reshape(CONV_OUT_CH, CONV_OUT_W, HIDDEN[0])          # (20, 139, 128)

    # h1[b, j] = sum_{c,t} (w0[c] x[b,t] + w1[c] x[b,t+1] + cb[c]) W1r[c,t,j] + b1[j]
    #          = sum_p x[b,p] * W_eff[p, j] + b_eff[j]
    A = jnp.einsum("c,ctj->tj", w_tap0, W1r)                        # (139, 128)
    Bm = jnp.einsum("c,ctj->tj", w_tap1, W1r)                       # (139, 128)
    W_eff = jnp.zeros((INPUT_SIZE, HIDDEN[0]), jnp.float32)
    W_eff = W_eff.at[:CONV_OUT_W].add(A)
    W_eff = W_eff.at[1:CONV_OUT_W + 1].add(Bm)
    b_eff = b1 + jnp.einsum("c,ctj->j", conv_b, W1r)                # (128,)

    # Lane-dense last layer: pad 5 -> 128 outputs; pad bias -1e30 keeps softmax exact.
    W3p = jnp.zeros((HIDDEN[1], OUT_PAD), jnp.float32).at[:, :OUTPUT_SIZE].set(W3.T)
    b3p = jnp.full((OUT_PAD,), NEG_BIG, jnp.float32).at[:OUTPUT_SIZE].set(b3)

    return {
        "W1": W_eff.astype(jnp.bfloat16), "b1": b_eff.reshape(1, HIDDEN[0]),
        "W2": W2.T.astype(jnp.bfloat16), "b2": b2.reshape(1, HIDDEN[1]),
        "W3": W3p.astype(jnp.bfloat16),  "b3": b3p.reshape(1, OUT_PAD),
    }


def _round_up(n, m):
    return ((n + m - 1) // m) * m


def conv_two_layer_forward(x_ncw, params):
    """x_ncw: (B, 1, 140) float32, exactly like the PyTorch module input."""
    B = x_ncw.shape[0]
    p = _prepare_params(params)

    # Batch tiling: sublane multiple of 8; 256-row multiples for big batches
    # (fills the MXU row dimension on v6e/v7x, stays under v5e's 16 MiB VMEM).
    if B >= 2048:
        b_tile = 1024
    elif B > 256:
        b_tile = 256
    else:
        b_tile = _round_up(max(B, 1), 8)
    b_pad = _round_up(B, b_tile)

    x = x_ncw.reshape(B, INPUT_SIZE).astype(jnp.bfloat16)
    if b_pad != B:
        x = jnp.pad(x, ((0, b_pad - B), (0, 0)))

    grid = (b_pad // b_tile,)
    x_spec = pl.BlockSpec((b_tile, INPUT_SIZE), lambda i: (i, 0))
    out_spec = pl.BlockSpec((b_tile, OUT_PAD), lambda i: (i, 0))

    def const_spec(shape):
        return pl.BlockSpec(shape, lambda i: (0, 0))   # resident across grid steps

    weight_bytes = 2 * (INPUT_SIZE * HIDDEN[0] + HIDDEN[0] * HIDDEN[1]
                        + HIDDEN[1] * OUT_PAD)
    bias_bytes = 4 * (HIDDEN[0] + HIDDEN[1] + OUT_PAD)
    cost = pl.CostEstimate(
        flops=2 * b_pad * (INPUT_SIZE * HIDDEN[0] + HIDDEN[0] * HIDDEN[1]
                           + HIDDEN[1] * OUT_PAD),
        transcendentals=2 * b_pad * OUT_PAD,
        bytes_accessed=b_pad * INPUT_SIZE * 2 + b_pad * OUT_PAD * 4
                       + weight_bytes + bias_bytes,
    )

    out = pl.pallas_call(
        _conv_two_layer_kernel,
        out_shape=jax.ShapeDtypeStruct((b_pad, OUT_PAD), jnp.float32),
        grid=grid,
        in_specs=[
            x_spec,
            const_spec((INPUT_SIZE, HIDDEN[0])),   # W_eff (bf16)
            const_spec((1, HIDDEN[0])),            # b_eff (f32)
            const_spec((HIDDEN[0], HIDDEN[1])),    # W2^T  (bf16)
            const_spec((1, HIDDEN[1])),            # b2    (f32)
            const_spec((HIDDEN[1], OUT_PAD)),      # W3^T padded (bf16)
            const_spec((1, OUT_PAD)),              # b3 padded   (f32)
        ],
        out_specs=out_spec,
        compiler_params=pltpu.CompilerParams(
            dimension_semantics=("parallel",),     # light up both TCs on v7x
        ),
        cost_estimate=cost,
    )(x, p["W1"], p["b1"], p["W2"], p["b2"], p["W3"], p["b3"])

    return out[:B, :OUTPUT_SIZE]


def _reference_forward_f32(x_ncw, params):
    """Pure-JAX f32 reference mirroring the PyTorch forward."""
    x = x_ncw[:, 0, :].astype(jnp.float32)
    y0 = x[:, :CONV_OUT_W]
    y1 = x[:, 1:CONV_OUT_W + 1]
    cw, cb = params["conv_w"], params["conv_b"]
    conv = (y0[:, None, :] * cw[None, :, 0, 0, None]
            + y1[:, None, :] * cw[None, :, 0, 1, None]
            + cb[None, :, None])                                    # (B, 20, 139)
    flat = conv.reshape(x.shape[0], -1)                             # (B, 2780)
    h1 = jnp.maximum(flat @ params["W1"].T + params["b1"], 0.0)
    h2 = jnp.maximum(h1 @ params["W2"].T + params["b2"], 0.0)
    logits = h2 @ params["W3"].T + params["b3"]
    return jax.nn.log_softmax(logits, axis=-1)


def _reference_forward_bf16(x_ncw, params):
    """Mirrors the kernel's exact folded-weight bf16/f32 arithmetic."""
    p = _prepare_params(params)
    x = x_ncw.reshape(x_ncw.shape[0], INPUT_SIZE).astype(jnp.bfloat16)
    h1 = jnp.maximum(
        jnp.dot(x, p["W1"], preferred_element_type=jnp.float32) + p["b1"], 0.0)
    h2 = jnp.maximum(
        jnp.dot(h1.astype(jnp.bfloat16), p["W2"],
                preferred_element_type=jnp.float32) + p["b2"], 0.0)
    logits = jnp.dot(h2.astype(jnp.bfloat16), p["W3"],
                     preferred_element_type=jnp.float32) + p["b3"]
    m = jnp.max(logits, axis=-1, keepdims=True)
    z = logits - m
    out = z - jnp.log(jnp.sum(jnp.exp(z), axis=-1, keepdims=True))
    return out[:, :OUTPUT_SIZE]


def _init_params(key):
    ks = jax.random.split(key, 8)

    def u(k, shape, fan_in):
        bound = 1.0 / jnp.sqrt(fan_in)
        return jax.random.uniform(k, shape, jnp.float32, -bound, bound)

    return {
        "conv_w": u(ks[0], (CONV_OUT_CH, 1, KERNEL_SIZE), 1 * KERNEL_SIZE),
        "conv_b": u(ks[1], (CONV_OUT_CH,), 1 * KERNEL_SIZE),
        "W1": u(ks[2], (HIDDEN[0], CONV_OUT_CH * CONV_OUT_W), CONV_OUT_CH * CONV_OUT_W),
        "b1": u(ks[3], (HIDDEN[0],), CONV_OUT_CH * CONV_OUT_W),
        "W2": u(ks[4], (HIDDEN[1], HIDDEN[0]), HIDDEN[0]),
        "b2": u(ks[5], (HIDDEN[1],), HIDDEN[0]),
        "W3": u(ks[6], (OUTPUT_SIZE, HIDDEN[1]), HIDDEN[1]),
        "b3": u(ks[7], (OUTPUT_SIZE,), HIDDEN[1]),
    }


if __name__ == "__main__":
    key = jax.random.PRNGKey(0)
    k_x, k_p = jax.random.split(key)

    B = 2
    x = jax.random.normal(k_x, (B, 1, INPUT_SIZE), dtype=jnp.float32)
    params = _init_params(k_p)

    out = jax.block_until_ready(conv_two_layer_forward(x, params))
    assert out.shape == (B, OUTPUT_SIZE)

    # Tight check against a reference doing the identical bf16/f32 arithmetic.
    ref_bf16 = jax.block_until_ready(_reference_forward_bf16(x, params))
    assert jnp.allclose(out, ref_bf16, atol=1e-3, rtol=1e-3), (out, ref_bf16)

    # Looser check against the full-f32 PyTorch-equivalent forward
    # (bf16 matmul operands introduce ~1e-2-level differences).
    ref_f32 = jax.block_until_ready(_reference_forward_f32(x, params))
    assert jnp.allclose(out, ref_f32, atol=3e-2, rtol=3e-2), (out, ref_f32)

    print("KERNEL_OK")
</pallas_src>

<mosaic_0001>
module attributes {stable_mosaic.version = 11 : i64} {
  func.func @_conv_two_layer_kernel(%arg0: i32, %arg1: memref<8x140xbf16, #tpu.memory_space<vmem>>, %arg2: memref<140x128xbf16, #tpu.memory_space<vmem>>, %arg3: memref<1x128xf32, #tpu.memory_space<vmem>>, %arg4: memref<128x64xbf16, #tpu.memory_space<vmem>>, %arg5: memref<1x64xf32, #tpu.memory_space<vmem>>, %arg6: memref<64x128xbf16, #tpu.memory_space<vmem>>, %arg7: memref<1x128xf32, #tpu.memory_space<vmem>>, %arg8: memref<8x128xf32, #tpu.memory_space<vmem>>) attributes {dimension_semantics = [#tpu.dimension_semantics<parallel>], iteration_bounds = array<i64: 1>, scalar_prefetch = 0 : i64, scratch_operands = 0 : i64, tpu.core_type = #tpu.core_type<tc>, window_params = [{transform_indices = @transform_0, window_bounds = array<i64: 8, 140>}, {pipeline_mode = #tpu.pipeline_mode<synchronous>, transform_indices = @transform_1, window_bounds = array<i64: 140, 128>}, {pipeline_mode = #tpu.pipeline_mode<synchronous>, transform_indices = @transform_2, window_bounds = array<i64: 1, 128>}, {pipeline_mode = #tpu.pipeline_mode<synchronous>, transform_indices = @transform_3, window_bounds = array<i64: 128, 64>}, {pipeline_mode = #tpu.pipeline_mode<synchronous>, transform_indices = @transform_4, window_bounds = array<i64: 1, 64>}, {pipeline_mode = #tpu.pipeline_mode<synchronous>, transform_indices = @transform_5, window_bounds = array<i64: 64, 128>}, {pipeline_mode = #tpu.pipeline_mode<synchronous>, transform_indices = @transform_6, window_bounds = array<i64: 1, 128>}, {transform_indices = @transform_7, window_bounds = array<i64: 8, 128>}]} {
    %c0 = arith.constant 0 : index
    %c0_0 = arith.constant 0 : index
    %0 = vector.load %arg1[%c0, %c0_0] : memref<8x140xbf16, #tpu.memory_space<vmem>>, vector<8x140xbf16>
    %c0_1 = arith.constant 0 : index
    %c0_2 = arith.constant 0 : index
    %1 = vector.load %arg2[%c0_1, %c0_2] : memref<140x128xbf16, #tpu.memory_space<vmem>>, vector<140x128xbf16>
    %cst = arith.constant dense<0.000000e+00> : vector<8x128xf32>
    %2 = tpu.matmul %0, %1, %cst {dimension_numbers = #tpu.dot_dimension_numbers<[1], [0], [0], [1], [0, 0, 1, 1], [], []>} : vector<8x140xbf16>, vector<140x128xbf16>, vector<8x128xf32> -> vector<8x128xf32>
    %c0_3 = arith.constant 0 : index
    %c0_4 = arith.constant 0 : index
    %3 = vector.load %arg3[%c0_3, %c0_4] : memref<1x128xf32, #tpu.memory_space<vmem>>, vector<1x128xf32>
    %4 = vector.broadcast %3 : vector<1x128xf32> to vector<8x128xf32>
    %5 = arith.addf %2, %4 : vector<8x128xf32>
    %cst_5 = arith.constant 0.000000e+00 : f32
    %6 = vector.broadcast %cst_5 : f32 to vector<8x128xf32>
    %7 = arith.maximumf %5, %6 : vector<8x128xf32>
    %8 = arith.truncf %7 : vector<8x128xf32> to vector<8x128xbf16>
    %c0_6 = arith.constant 0 : index
    %c0_7 = arith.constant 0 : index
    %9 = vector.load %arg4[%c0_6, %c0_7] : memref<128x64xbf16, #tpu.memory_space<vmem>>, vector<128x64xbf16>
    %cst_8 = arith.constant dense<0.000000e+00> : vector<8x64xf32>
    %10 = tpu.matmul %8, %9, %cst_8 {dimension_numbers = #tpu.dot_dimension_numbers<[1], [0], [0], [1], [0, 0, 1, 1], [], []>} : vector<8x128xbf16>, vector<128x64xbf16>, vector<8x64xf32> -> vector<8x64xf32>
    %c0_9 = arith.constant 0 : index
    %c0_10 = arith.constant 0 : index
    %11 = vector.load %arg5[%c0_9, %c0_10] : memref<1x64xf32, #tpu.memory_space<vmem>>, vector<1x64xf32>
    %12 = vector.broadcast %11 : vector<1x64xf32> to vector<8x64xf32>
    %13 = arith.addf %10, %12 : vector<8x64xf32>
    %cst_11 = arith.constant 0.000000e+00 : f32
    %14 = vector.broadcast %cst_11 : f32 to vector<8x64xf32>
    %15 = arith.maximumf %13, %14 : vector<8x64xf32>
    %16 = arith.truncf %15 : vector<8x64xf32> to vector<8x64xbf16>
    %c0_12 = arith.constant 0 : index
    %c0_13 = arith.constant 0 : index
    %17 = vector.load %arg6[%c0_12, %c0_13] : memref<64x128xbf16, #tpu.memory_space<vmem>>, vector<64x128xbf16>
    %cst_14 = arith.constant dense<0.000000e+00> : vector<8x128xf32>
    %18 = tpu.matmul %16, %17, %cst_14 {dimension_numbers = #tpu.dot_dimension_numbers<[1], [0], [0], [1], [0, 0, 1, 1], [], []>} : vector<8x64xbf16>, vector<64x128xbf16>, vector<8x128xf32> -> vector<8x128xf32>
    %c0_15 = arith.constant 0 : index
    %c0_16 = arith.constant 0 : index
    %19 = vector.load %arg7[%c0_15, %c0_16] : memref<1x128xf32, #tpu.memory_space<vmem>>, vector<1x128xf32>
    %20 = vector.broadcast %19 : vector<1x128xf32> to vector<8x128xf32>
    %21 = arith.addf %18, %20 : vector<8x128xf32>
    %cst_17 = arith.constant dense<0xFF800000> : vector<8xf32>
    %22 = vector.multi_reduction <maximumf>, %21, %cst_17 [1] : vector<8x128xf32> to vector<8xf32>
    %23 = vector.shape_cast %22 : vector<8xf32> to vector<8x1xf32>
    %24 = vector.broadcast %23 : vector<8x1xf32> to vector<8x128xf32>
    %25 = arith.subf %21, %24 : vector<8x128xf32>
    %26 = math.exp %25 : vector<8x128xf32>
    %cst_18 = arith.constant dense<0.000000e+00> : vector<8xf32>
    %27 = vector.multi_reduction <add>, %26, %cst_18 [1] : vector<8x128xf32> to vector<8xf32>
    %28 = vector.shape_cast %27 : vector<8xf32> to vector<8x1xf32>
    %29 = math.log %28 : vector<8x1xf32>
    %30 = vector.broadcast %29 : vector<8x1xf32> to vector<8x128xf32>
    %31 = arith.subf %25, %30 : vector<8x128xf32>
    %c0_19 = arith.constant 0 : index
    %c0_20 = arith.constant 0 : index
    %32 = vector.load %arg8[%c0_19, %c0_20] : memref<8x128xf32, #tpu.memory_space<vmem>>, vector<8x128xf32>
    tpu.vector_store %arg8[%c0_19, %c0_20], %31 {strides = array<i32>} : memref<8x128xf32, #tpu.memory_space<vmem>>, vector<8x128xf32>,
    return
  }
  func.func @transform_0(%arg0: i32) -> (i32, i32) {
    %c0_i32 = arith.constant 0 : i32
    %c0_i32_0 = arith.constant 0 : i32
    return %arg0, %c0_i32 : i32, i32
  }
  func.func @transform_1(%arg0: i32) -> (i32, i32) {
    %c0_i32 = arith.constant 0 : i32
    %c0_i32_0 = arith.constant 0 : i32
    %c0_i32_1 = arith.constant 0 : i32
    return %c0_i32, %c0_i32_0 : i32, i32
  }
  func.func @transform_2(%arg0: i32) -> (i32, i32) {
    %c0_i32 = arith.constant 0 : i32
    %c0_i32_0 = arith.constant 0 : i32
    %c0_i32_1 = arith.constant 0 : i32
    return %c0_i32, %c0_i32_0 : i32, i32
  }
  func.func @transform_3(%arg0: i32) -> (i32, i32) {
    %c0_i32 = arith.constant 0 : i32
    %c0_i32_0 = arith.constant 0 : i32
    %c0_i32_1 = arith.constant 0 : i32
    return %c0_i32, %c0_i32_0 : i32, i32
  }
  func.func @transform_4(%arg0: i32) -> (i32, i32) {
    %c0_i32 = arith.constant 0 : i32
    %c0_i32_0 = arith.constant 0 : i32
    %c0_i32_1 = arith.constant 0 : i32
    return %c0_i32, %c0_i32_0 : i32, i32
  }
  func.func @transform_5(%arg0: i32) -> (i32, i32) {
    %c0_i32 = arith.constant 0 : i32
    %c0_i32_0 = arith.constant 0 : i32
    %c0_i32_1 = arith.constant 0 : i32
    return %c0_i32, %c0_i32_0 : i32, i32
  }
  func.func @transform_6(%arg0: i32) -> (i32, i32) {
    %c0_i32 = arith.constant 0 : i32
    %c0_i32_0 = arith.constant 0 : i32
    %c0_i32_1 = arith.constant 0 : i32
    return %c0_i32, %c0_i32_0 : i32, i32
  }
  func.func @transform_7(%arg0: i32) -> (i32, i32) {
    %c0_i32 = arith.constant 0 : i32
    %c0_i32_0 = arith.constant 0 : i32
    return %arg0, %c0_i32 : i32, i32
  }
}

</mosaic_0001>

<llo_original>
// kernel: tpu_custom_call.1
$region0: #{tpu_custom_call.1}
  #allocation0 [shape = 'u32[]', space=smem, size = 0x4, offset = 0x4, fixed_abs, tag = 'smem constant byte address 0x4 - core index']
  #allocation1 [shape = 'u32[144,128]{1,0:T(1,128)}', space=vmem, size = 0x12000, scoped, tag = 'internal scratch']
  %s0 = inlined_call_operand.hbm [shape: bf16[8,140], index: 0, kind: input, shape index: {}]
  %s1 = inlined_call_operand.vmem [shape: bf16[140,128], index: 1, kind: input, shape index: {}]
  %s2 = inlined_call_operand.vmem [shape: f32[1,128], index: 2, kind: input, shape index: {}]
  %s3 = inlined_call_operand.vmem [shape: bf16[128,64], index: 3, kind: input, shape index: {}]
  %s4 = inlined_call_operand.vmem [shape: f32[1,64], index: 4, kind: input, shape index: {}]
  %s5 = inlined_call_operand.vmem [shape: bf16[64,128], index: 5, kind: input, shape index: {}]
  %s6 = inlined_call_operand.vmem [shape: f32[1,128], index: 6, kind: input, shape index: {}]
  %s7 = inlined_call_operand.hbm [shape: f32[8,128], index: 7, kind: output, shape index: {}]
  %s8 = sld [smem:[#allocation0]]
  $region42: #{tpu_custom_call.1} parent=0
    _
  %s10 = ssub.s32 1, %s8
  %s11 = scalar_select 0, %s10, %s8
  $region1: #{tpu_custom_call.1} parent=0
    #allocation2 [shape = 'u8[4096]{0}', space=vmem, size = 0x1000, scoped, tag = 'input window, operand 0, single buffered']
    #allocation3 [shape = 's32[1]{0}', space=sflag, size = 0x4, scoped, tag = 'scoped memory for tpu_custom_call.1']
    #allocation4 [shape = 's32[1]{0}', space=sflag, size = 0x4, scoped, tag = 'scoped memory for tpu_custom_call.1']
    #allocation5 [shape = 'u8[4096]{0}', space=vmem, size = 0x1000, scoped, tag = 'output window, operand 0, single buffered']
    %12 = vsyncpa [#allocation3], 0
    %13 = vsyncpa [#allocation4], 0
    // Predicated region
    $region2: #{tpu_custom_call.1} parent=1 // pred_check
      _
    $region3: #{tpu_custom_call.1} parent=1 // pred_check_branch
      %15 = sbr.rel (0) target = $region5
    $region4: #{tpu_custom_call.1} parent=1 // pred_region
      %s17 = ssub.s32 128, 128
      %18 = vsyncadd [#allocation3], %s17
      %s20 = sshll.u32 [#allocation2], 4
      %s21 = int_to_ptr.vmem [resolvable:$true] %s20
      %23 = dma.hbm_to_vmem [thread:$0]  %s0, 128, %s21, [#allocation3]
    $region5: #{tpu_custom_call.1} parent=1 // pred_fallthru
      _
    // Predicated region
    $region6: #{tpu_custom_call.1} parent=1 // pred_check
      _
    $region7: #{tpu_custom_call.1} parent=1 // pred_check_branch
      %25 = sbr.rel (0) target = $region9
    $region8: #{tpu_custom_call.1} parent=1 // pred_region
      _
    $region9: #{tpu_custom_call.1} parent=1 // pred_fallthru
      _
    // Predicated region
    $region10: #{tpu_custom_call.1} parent=1 // pred_check
      _
    $region11: #{tpu_custom_call.1} parent=1 // pred_check_branch
      %27 = sbr.rel (0) target = $region13
    $region12: #{tpu_custom_call.1} parent=1 // pred_region
      _
    $region13: #{tpu_custom_call.1} parent=1 // pred_fallthru
      _
    // Predicated region
    $region14: #{tpu_custom_call.1} parent=1 // pred_check
      _
    $region15: #{tpu_custom_call.1} parent=1 // pred_check_branch
      %29 = sbr.rel (0) target = $region17
    $region16: #{tpu_custom_call.1} parent=1 // pred_region
      _
    $region17: #{tpu_custom_call.1} parent=1 // pred_fallthru
      _
    // Predicated region
    $region18: #{tpu_custom_call.1} parent=1 // pred_check
      _
    $region19: #{tpu_custom_call.1} parent=1 // pred_check_branch
      %31 = sbr.rel (0) target = $region21
    $region20: #{tpu_custom_call.1} parent=1 // pred_region
      _
    $region21: #{tpu_custom_call.1} parent=1 // pred_fallthru
      _
    // Predicated region
    $region22: #{tpu_custom_call.1} parent=1 // pred_check
      _
    $region23: #{tpu_custom_call.1} parent=1 // pred_check_branch
      %33 = sbr.rel (0) target = $region25
    $region24: #{tpu_custom_call.1} parent=1 // pred_region
      _
    $region25: #{tpu_custom_call.1} parent=1 // pred_fallthru
      _
    // Predicated region
    $region26: #{tpu_custom_call.1} parent=1 // pred_check
      _
    $region27: #{tpu_custom_call.1} parent=1 // pred_check_branch
      %35 = sbr.rel (0) target = $region29
    $region28: #{tpu_custom_call.1} parent=1 // pred_region
      _
    $region29: #{tpu_custom_call.1} parent=1 // pred_fallthru
      _
    // Predicated region
    $region30: #{tpu_custom_call.1} parent=1 // pred_check
      _
    $region31: #{tpu_custom_call.1} parent=1 // pred_check_branch
      %37 = sbr.rel (0) target = $region33
    $region32: #{tpu_custom_call.1} parent=1 // pred_region
      %38 = dma.done [#allocation3], 128
    $region33: #{tpu_custom_call.1} parent=1 // pred_fallthru
      _
    %v40 = vld [vmem:[#allocation2] sm:$0xff]
    %v41 = vld [vmem:[%s1] sm:$0xf]
    %v42 = vld [vmem:[%s1 + $0x4] sm:$0xf]
    %v43 = vld [vmem:[%s1 + $0x8] sm:$0xf]
    %v44 = vld [vmem:[%s1 + $0xc] sm:$0xf]
    %v45 = vld [vmem:[%s1 + $0x10] sm:$0xf]
    %v46 = vld [vmem:[%s1 + $0x14] sm:$0xf]
    %v47 = vld [vmem:[%s1 + $0x18] sm:$0xf]
    %v48 = vld [vmem:[%s1 + $0x1c] sm:$0xf]
    %v49 = vld [vmem:[%s1 + $0x20] sm:$0xf]
    %v50 = vld [vmem:[%s1 + $0x24] sm:$0xf]
    %v51 = vld [vmem:[%s1 + $0x28] sm:$0xf]
    %v52 = vld [vmem:[%s1 + $0x2c] sm:$0xf]
    %v53 = vld [vmem:[%s1 + $0x30] sm:$0xf]
    %v54 = vld [vmem:[%s1 + $0x34] sm:$0xf]
    %v55 = vld [vmem:[%s1 + $0x38] sm:$0xf]
    %v56 = vld [vmem:[%s1 + $0x3c] sm:$0xf]
    %v57 = vld [vmem:[%s1 + $0x40] sm:$0xf]
    %v58 = vld [vmem:[%s1 + $0x44] sm:$0x3]
    %v59 = vld [vmem:[%s2] sm:$0x1]
    %v61 = vlaneseq
    %v62 = vshrl.u32 %v61, 7
    %v63 = vsub.s32 0, %v62
    %v64 = vrot.slane %v59, %v63
    %v67 = vunpack.c.l.b16 %v40
    %v68 = vunpack.c.h.b16 %v40
    %v69 = vpack.c.b16 %v67, %v67
    %v70 = vpack.c.b16 %v68, %v68
    %v90 = vunpack.c.l.b16 %v41
    %v91 = vunpack.c.l.b16 %v42
    %v92 = vunpack.c.l.b16 %v43
    %v93 = vunpack.c.l.b16 %v44
    %v94 = vunpack.c.l.b16 %v45
    %v95 = vunpack.c.l.b16 %v46
    %v96 = vunpack.c.l.b16 %v47
    %v97 = vunpack.c.l.b16 %v48
    %v98 = vunpack.c.l.b16 %v49
    %v99 = vunpack.c.l.b16 %v50
    %v100 = vunpack.c.l.b16 %v51
    %v101 = vunpack.c.l.b16 %v52
    %v102 = vunpack.c.l.b16 %v53
    %v103 = vunpack.c.l.b16 %v54
    %v104 = vunpack.c.l.b16 %v55
    %v105 = vunpack.c.l.b16 %v56
    %v106 = vunpack.c.l.b16 %v57
    %v107 = vunpack.c.l.b16 %v58
    %v108 = vpack.c.b16 %v91, %v90
    %v109 = vpack.c.b16 %v93, %v92
    %v110 = vpack.c.b16 %v95, %v94
    %v111 = vpack.c.b16 %v97, %v96
    %v112 = vpack.c.b16 %v99, %v98
    %v113 = vpack.c.b16 %v101, %v100
    %v114 = vpack.c.b16 %v103, %v102
    %v115 = vpack.c.b16 %v105, %v104
    %v116 = vpack.c.b16 %v107, %v106
    %vm125 = vcmask 97280
    %v127 = vsel %vm125, %v70, 0
    %vm129 = vcmask 1045504
    %v131 = vsel %vm129, %v116, 0
    %133 = vmatprep.subr.bf16.mxu0 0
    %134 = vmatpush1.bf16.msra.mxu0 %v108
    %135 = vmatprep.subr.bf16.mxu0 0
    %136 = vmatpush1.bf16.msra.mxu0 %v109
    %137 = vmatprep.subr.bf16.mxu0 0
    %138 = vmatpush1.bf16.msra.mxu0 %v110
    %139 = vmatprep.subr.bf16.mxu0 0
    %140 = vmatpush1.bf16.msra.mxu0 %v111
    %141 = vmatprep.subr.bf16.mxu0 0
    %142 = vmatpush1.bf16.msra.mxu0 %v112
    %143 = vmatprep.subr.bf16.mxu0 0
    %144 = vmatpush1.bf16.msra.mxu0 %v113
    %145 = vmatprep.subr.bf16.mxu0 0
    %146 = vmatpush1.bf16.msra.mxu0 %v114
    %147 = vmatprep.subr.bf16.mxu0 0
    %148 = vmatpush1.bf16.msra.mxu0 %v115
    %149 = vmatprep.subr.bf16.mxu0 0
    %150 = vmatpush1.bf16.msra.mxu0 %v131
    %151 = vmatprep.subr.bf16.mxu0 0
    %152 = vmatpush1.bf16.msra.mxu0 0
    %153 = vmatprep.subr.bf16.mxu0 0
    %154 = vmatpush1.bf16.msra.mxu0 0
    %155 = vmatprep.subr.bf16.mxu0 0
    %156 = vmatpush1.bf16.msra.mxu0 0
    %157 = vmatprep.subr.bf16.mxu0 0
    %158 = vmatpush1.bf16.msra.mxu0 0
    %159 = vmatprep.subr.bf16.mxu0 0
    %160 = vmatpush1.bf16.msra.mxu0 0
    %161 = vmatprep.subr.bf16.mxu0 0
    %162 = vmatpush1.bf16.msra.mxu0 0
    %163 = vmatprep.subr.bf16.mxu0 0
    %164 = vmatpush1.bf16.msra.mxu0 0
    %165 = vmatprep.mubr.bf16.mxu0 %v127
    %166 = vmatmul.mubr.bf16.gmra.mrb[0].mxu0 %v69
    %v167 = vpop.f32.mrb[0].mxu0
    %v168 = vadd.f32 %v64, %v167
    %v169 = vpop.f32.mrb[0].mxu0
    %v170 = vpop.f32.mrb[0].mxu0
    %v171 = vpop.f32.mrb[0].mxu0
    %172 = vdwg.mxu0
    %v173 = vmax.f32 %v168, 0.0
    %v174 = vpack.c.bf16 %v173, %v173
    %v175 = vld [vmem:[%s3] sm:$0xf]
    %v176 = vld [vmem:[%s3 + $0x4] sm:$0xf]
    %v177 = vld [vmem:[%s3 + $0x8] sm:$0xf]
    %v178 = vld [vmem:[%s3 + $0xc] sm:$0xf]
    %v179 = vld [vmem:[%s3 + $0x10] sm:$0xf]
    %v180 = vld [vmem:[%s3 + $0x14] sm:$0xf]
    %v181 = vld [vmem:[%s3 + $0x18] sm:$0xf]
    %v182 = vld [vmem:[%s3 + $0x1c] sm:$0xf]
    %v183 = vld [vmem:[%s3 + $0x20] sm:$0xf]
    %v184 = vld [vmem:[%s3 + $0x24] sm:$0xf]
    %v185 = vld [vmem:[%s3 + $0x28] sm:$0xf]
    %v186 = vld [vmem:[%s3 + $0x2c] sm:$0xf]
    %v187 = vld [vmem:[%s3 + $0x30] sm:$0xf]
    %v188 = vld [vmem:[%s3 + $0x34] sm:$0xf]
    %v189 = vld [vmem:[%s3 + $0x38] sm:$0xf]
    %v190 = vld [vmem:[%s3 + $0x3c] sm:$0xf]
    %v191 = vld [vmem:[%s4] sm:$0x1]
    %v193 = vlaneseq
    %v194 = vshrl.u32 %v193, 7
    %v195 = vsub.s32 0, %v194
    %v196 = vrot.slane %v191, %v195
    %v214 = vunpack.c.l.b16 %v175
    %v215 = vunpack.c.l.b16 %v176
    %v216 = vunpack.c.l.b16 %v177
    %v217 = vunpack.c.l.b16 %v178
    %v218 = vunpack.c.l.b16 %v179
    %v219 = vunpack.c.l.b16 %v180
    %v220 = vunpack.c.l.b16 %v181
    %v221 = vunpack.c.l.b16 %v182
    %v222 = vunpack.c.l.b16 %v183
    %v223 = vunpack.c.l.b16 %v184
    %v224 = vunpack.c.l.b16 %v185
    %v225 = vunpack.c.l.b16 %v186
    %v226 = vunpack.c.l.b16 %v187
    %v227 = vunpack.c.l.b16 %v188
    %v228 = vunpack.c.l.b16 %v189
    %v229 = vunpack.c.l.b16 %v190
    %v230 = vpack.c.b16 %v215, %v214
    %v231 = vpack.c.b16 %v217, %v216
    %v232 = vpack.c.b16 %v219, %v218
    %v233 = vpack.c.b16 %v221, %v220
    %v234 = vpack.c.b16 %v223, %v222
    %v235 = vpack.c.b16 %v225, %v224
    %v236 = vpack.c.b16 %v227, %v226
    %v237 = vpack.c.b16 %v229, %v228
    %246 = vmatprep.subr.bf16.mxu0 0
    %247 = vmatpush1.bf16.msra.mxu0 %v230
    %248 = vmatprep.subr.bf16.mxu0 0
    %249 = vmatpush1.bf16.msra.mxu0 %v231
    %250 = vmatprep.subr.bf16.mxu0 0
    %251 = vmatpush1.bf16.msra.mxu0 %v232
    %252 = vmatprep.subr.bf16.mxu0 0
    %253 = vmatpush1.bf16.msra.mxu0 %v233
    %254 = vmatprep.subr.bf16.mxu0 0
    %255 = vmatpush1.bf16.msra.mxu0 %v234
    %256 = vmatprep.subr.bf16.mxu0 0
    %257 = vmatpush1.bf16.msra.mxu0 %v235
    %258 = vmatprep.subr.bf16.mxu0 0
    %259 = vmatpush1.bf16.msra.mxu0 %v236
    %260 = vmatprep.subr.bf16.mxu0 0
    %261 = vmatpush1.bf16.msra.mxu0 %v237
    %262 = vmatprep.subr.bf16.mxu0 0
    %263 = vmatpush1.bf16.msra.mxu0 0
    %264 = vmatprep.subr.bf16.mxu0 0
    %265 = vmatpush1.bf16.msra.mxu0 0
    %266 = vmatprep.subr.bf16.mxu0 0
    %267 = vmatpush1.bf16.msra.mxu0 0
    %268 = vmatprep.subr.bf16.mxu0 0
    %269 = vmatpush1.bf16.msra.mxu0 0
    %270 = vmatprep.subr.bf16.mxu0 0
    %271 = vmatpush1.bf16.msra.mxu0 0
    %272 = vmatprep.subr.bf16.mxu0 0
    %273 = vmatpush1.bf16.msra.mxu0 0
    %274 = vmatprep.subr.bf16.mxu0 0
    %275 = vmatpush1.bf16.msra.mxu0 0
    %276 = vmatprep.subr.bf16.mxu0 0
    %277 = vmatpush1.bf16.msra.mxu0 0
    %278 = vmatprep.mubr.bf16.mxu0 0
    %279 = vmatmul.mubr.bf16.gmra.mrb[0].mxu0 %v174
    %v280 = vpop.f32.mrb[0].mxu0
    %v281 = vadd.f32 %v196, %v280
    %v282 = vpop.f32.mrb[0].mxu0
    %v283 = vpop.f32.mrb[0].mxu0
    %v284 = vpop.f32.mrb[0].mxu0
    %285 = vdwg.mxu0
    %v286 = vmax.f32 %v281, 0.0
    %v287 = vpack.c.bf16 %v286, %v286
    %v288 = vld [vmem:[%s5] sm:$0xf]
    %v289 = vld [vmem:[%s5 + $0x4] sm:$0xf]
    %v290 = vld [vmem:[%s5 + $0x8] sm:$0xf]
    %v291 = vld [vmem:[%s5 + $0xc] sm:$0xf]
    %v292 = vld [vmem:[%s5 + $0x10] sm:$0xf]
    %v293 = vld [vmem:[%s5 + $0x14] sm:$0xf]
    %v294 = vld [vmem:[%s5 + $0x18] sm:$0xf]
    %v295 = vld [vmem:[%s5 + $0x1c] sm:$0xf]
    %v296 = vld [vmem:[%s6] sm:$0x1]
    %v298 = vlaneseq
    %v299 = vshrl.u32 %v298, 7
    %v300 = vsub.s32 0, %v299
    %v301 = vrot.slane %v296, %v300
    %v311 = vunpack.c.l.b16 %v288
    %v312 = vunpack.c.l.b16 %v289
    %v313 = vunpack.c.l.b16 %v290
    %v314 = vunpack.c.l.b16 %v291
    %v315 = vunpack.c.l.b16 %v292
    %v316 = vunpack.c.l.b16 %v293
    %v317 = vunpack.c.l.b16 %v294
    %v318 = vunpack.c.l.b16 %v295
    %v319 = vpack.c.b16 %v312, %v311
    %v320 = vpack.c.b16 %v314, %v313
    %v321 = vpack.c.b16 %v316, %v315
    %v322 = vpack.c.b16 %v318, %v317
    %vm327 = vcmask 523264
    %v329 = vsel %vm327, %v287, 0
    %331 = vmatprep.subr.bf16.mxu0 0
    %332 = vmatpush1.bf16.msra.mxu0 %v319
    %333 = vmatprep.subr.bf16.mxu0 0
    %334 = vmatpush1.bf16.msra.mxu0 %v320
    %335 = vmatprep.subr.bf16.mxu0 0
    %336 = vmatpush1.bf16.msra.mxu0 %v321
    %337 = vmatprep.subr.bf16.mxu0 0
    %338 = vmatpush1.bf16.msra.mxu0 %v322
    %339 = vmatprep.subr.bf16.mxu0 0
    %340 = vmatpush1.bf16.msra.mxu0 0
    %341 = vmatprep.subr.bf16.mxu0 0
    %342 = vmatpush1.bf16.msra.mxu0 0
    %343 = vmatprep.subr.bf16.mxu0 0
    %344 = vmatpush1.bf16.msra.mxu0 0
    %345 = vmatprep.subr.bf16.mxu0 0
    %346 = vmatpush1.bf16.msra.mxu0 0
    %347 = vmatprep.subr.bf16.mxu0 0
    %348 = vmatpush1.bf16.msra.mxu0 0
    %349 = vmatprep.subr.bf16.mxu0 0
    %350 = vmatpush1.bf16.msra.mxu0 0
    %351 = vmatprep.subr.bf16.mxu0 0
    %352 = vmatpush1.bf16.msra.mxu0 0
    %353 = vmatprep.subr.bf16.mxu0 0
    %354 = vmatpush1.bf16.msra.mxu0 0
    %355 = vmatprep.subr.bf16.mxu0 0
    %356 = vmatpush1.bf16.msra.mxu0 0
    %357 = vmatprep.subr.bf16.mxu0 0
    %358 = vmatpush1.bf16.msra.mxu0 0
    %359 = vmatprep.subr.bf16.mxu0 0
    %360 = vmatpush1.bf16.msra.mxu0 0
    %361 = vmatprep.subr.bf16.mxu0 0
    %362 = vmatpush1.bf16.msra.mxu0 0
    %363 = vmatprep.mubr.bf16.mxu0 0
    %364 = vmatmul.mubr.bf16.gmra.mrb[0].mxu0 %v329
    %v365 = vpop.f32.mrb[0].mxu0
    %v366 = vadd.f32 %v301, %v365
    %v367 = vpop.f32.mrb[0].mxu0
    %v368 = vpop.f32.mrb[0].mxu0
    %v369 = vpop.f32.mrb[0].mxu0
    %370 = vdwg.mxu0
    %371 = vmax.xlane.f32.xlu0 %v366
    %v372 = vpop.xlane.xlu0 %371
    %v373 = vsub.f32 %v366, %v372
    %v374 = vmul.f32 %v373, 1.442695
    %v375 = vpow.pop %v374
    %376 = vadd.xlane.f32.xlu0 %v375
    %v377 = vpop.xlane.xlu0 %376
    %v378 = vlog2.pop %v377
    %v379 = vmul.f32 %v378, 0.6931472
    %v380 = vsub.f32 %v373, %v379
    %381 = vst [vmem:[#allocation5] sm:$0xff] %v380
    // Predicated region
    $region34: #{tpu_custom_call.1} parent=1 // pred_check
      _
    $region35: #{tpu_custom_call.1} parent=1 // pred_check_branch
      %383 = sbr.rel (0) target = $region37
    $region36: #{tpu_custom_call.1} parent=1 // pred_region
      %s385 = ssub.s32 128, 128
      %386 = vsyncadd [#allocation4], %s385
      %s388 = sshll.u32 [#allocation5], 4
      %s389 = int_to_ptr.vmem [resolvable:$true] %s388
      %391 = dma.vmem_to_hbm [thread:$0]  %s389, 128, %s7, [#allocation4]
    $region37: #{tpu_custom_call.1} parent=1 // pred_fallthru
      _
    // Predicated region
    $region38: #{tpu_custom_call.1} parent=1 // pred_check
      _
    $region39: #{tpu_custom_call.1} parent=1 // pred_check_branch
      %393 = sbr.rel (0) target = $region41
    $region40: #{tpu_custom_call.1} parent=1 // pred_region
      %394 = dma.done [#allocation4], 128
    $region41: #{tpu_custom_call.1} parent=1 // pred_fallthru
      _
    %395 = vsyncpa [#allocation3], 1
    %396 = vsyncpa [#allocation4], 1

</llo_original>
